<compile_context>
chip_gen: v6e
topology: v6e:2x2x1
jax: 0.10.0
libtpu: 0.0.40
codegen_flags: <defaults>
</compile_context>

<pallas_src>
import math

import jax
import jax.numpy as jnp
from jax.experimental import pallas as pl
from jax.experimental.pallas import tpu as pltpu


def _round_up(a: int, b: int) -> int:
    return ((a + b - 1) // b) * b


def relu_relay_kernel(x_ref, m_ref, o_ref):
    # x_ref / o_ref: (tile_n, tile_k); m_ref: (1, tile_k) broadcast over batch.
    x = x_ref[...]
    m = m_ref[...]
    # relu(x)*m + x*(1-m)  ==  x - m*min(x, 0)   (3 VPU ops, no (1-m) temporary)
    o_ref[...] = (x - m * jnp.minimum(x, 0)).astype(o_ref.dtype)


def relu_masked_relay_forward(x, mask, *, target_block_bytes=4 << 20,
                              max_tile_k=8192, donate_x=False):
    """x: (N, *feat); mask: feat-shaped, broadcast over batch. Returns x.shape."""
    orig_shape = x.shape
    N = x.shape[0]
    K = math.prod(x.shape[1:]) if x.ndim > 1 else 1

    x2 = x.reshape(N, K)
    # Cast the mask to x.dtype so bf16/int8 inputs don't promote to f32.
    m2 = jnp.asarray(mask, dtype=x.dtype).reshape(1, K)

    itemsize = jnp.dtype(x.dtype).itemsize
    sub = max(8, 32 // itemsize)  # min sublane multiple: f32->8, bf16->16, int8->32

    # Lane-dense last axis; no padding - the last k-block may be partial.
    tile_k = min(max_tile_k, _round_up(K, 128))

    # Pick tile_n so one block is ~target_block_bytes.
    rows = max(sub, target_block_bytes // (tile_k * itemsize))
    tile_n = (rows // sub) * sub
    if N <= tile_n:
        tile_n = N  # full batch dim in a single block (always a legal block dim)

    n_tiles = pl.cdiv(N, tile_n)
    k_tiles = pl.cdiv(K, tile_k)

    # v7x has 2 TensorCores/chip: if the whole (non-trivial) tensor fits one
    # block, split K so the parallel grid can shard across both cores.
    if n_tiles == 1 and k_tiles == 1 and N * K * itemsize > (1 << 20) and K >= 256:
        tile_k = _round_up(pl.cdiv(K, 2), 128)
        k_tiles = pl.cdiv(K, tile_k)

    block_bytes = tile_n * tile_k * itemsize
    # 2x double-buffered (x in + out) blocks + tiny mask blocks + margin.
    # Raising the limit is needed on v5e (16 MiB scoped default) and safe on
    # every generation (<= 48 MiB leaves headroom under v7x's 64 MiB VMEM).
    vmem_limit = min(
        max(4 * block_bytes + 4 * tile_k * itemsize + (8 << 20), 32 << 20),
        48 << 20,
    )

    grid = (k_tiles, n_tiles)  # batch innermost -> mask block is never refetched

    extra_kwargs = {}
    if donate_x:
        extra_kwargs["input_output_aliases"] = {0: 0}

    out = pl.pallas_call(
        relu_relay_kernel,
        out_shape=jax.ShapeDtypeStruct((N, K), x.dtype),
        grid=grid,
        in_specs=[
            pl.BlockSpec((tile_n, tile_k), lambda j, i: (i, j)),
            pl.BlockSpec((1, tile_k), lambda j, i: (0, j)),  # batch-invariant mask
        ],
        out_specs=pl.BlockSpec((tile_n, tile_k), lambda j, i: (i, j)),
        compiler_params=pltpu.CompilerParams(
            dimension_semantics=("parallel", "parallel"),
            vmem_limit_bytes=int(vmem_limit),
        ),
        **extra_kwargs,
    )(x2, m2)

    return out.reshape(orig_shape)


def reference_forward(x, mask):
    m = jnp.broadcast_to(mask, x.shape).astype(x.dtype)
    return jnp.maximum(x, 0) * m + x * (1 - m)


if __name__ == "__main__":
    key = jax.random.PRNGKey(0)
    kx, kaux = jax.random.split(key)

    # --- Test 1: module init path (alpha_mask = 1.0), f32, 128-aligned K ---
    N, C, H, W = 2, 4, 16, 16
    x = jax.random.normal(kx, (N, C, H, W), dtype=jnp.float32)

    # Parameter init matching __init__/init_w_aux on the first forward call:
    # alpha_aux ~ U(0,1) (only used by the STE backward), alpha_mask = 1.0.
    alpha_aux_0_0 = jax.random.uniform(kaux, (C, H, W), dtype=jnp.float32)  # noqa: F841
    alpha_mask_0_0 = jnp.ones((C, H, W), dtype=jnp.float32)
    # TODO(synk): update_mask / mask_density_forward are stateful bookkeeping
    # outside the forward hot path and are not implemented as kernels.

    out = jax.block_until_ready(relu_masked_relay_forward(x, alpha_mask_0_0))
    ref = reference_forward(x, alpha_mask_0_0)
    assert out.shape == x.shape and out.dtype == x.dtype
    assert jnp.allclose(out, ref, atol=1e-6, rtol=1e-6)

    # --- Test 2: non-128-aligned feature size + non-trivial 0/1 mask ---
    N2, C2, H2, W2 = 3, 3, 10, 10  # K = 300, not a multiple of 128
    x_b = jax.random.normal(jax.random.PRNGKey(1), (N2, C2, H2, W2), jnp.float32)
    mask_b = (jax.random.uniform(jax.random.PRNGKey(2), (C2, H2, W2)) > 0.5
              ).astype(jnp.float32)
    out_b = jax.block_until_ready(relu_masked_relay_forward(x_b, mask_b))
    assert jnp.allclose(out_b, reference_forward(x_b, mask_b), atol=1e-6, rtol=1e-6)

    # --- Test 3: bf16 input with f32 mask (mask is cast inside the wrapper) ---
    x_c = jax.random.normal(jax.random.PRNGKey(3), (4, 4, 16, 16), jnp.bfloat16)
    mask_c = (jax.random.uniform(jax.random.PRNGKey(4), (4, 16, 16)) > 0.5
              ).astype(jnp.float32)
    out_c = jax.block_until_ready(relu_masked_relay_forward(x_c, mask_c))
    assert out_c.dtype == jnp.bfloat16
    ref_c = reference_forward(x_c.astype(jnp.float32), mask_c)
    assert jnp.allclose(out_c.astype(jnp.float32), ref_c, atol=3e-2, rtol=3e-2)

    print("KERNEL_OK")
</pallas_src>

<mosaic_0001>
module attributes {stable_mosaic.version = 11 : i64} {
  func.func @relu_relay_kernel(%arg0: i32, %arg1: i32, %arg2: memref<2x1024xf32, #tpu.memory_space<vmem>>, %arg3: memref<1x1024xf32, #tpu.memory_space<vmem>>, %arg4: memref<2x1024xf32, #tpu.memory_space<vmem>>) attributes {dimension_semantics = [#tpu.dimension_semantics<parallel>, #tpu.dimension_semantics<parallel>], iteration_bounds = array<i64: 1, 1>, scalar_prefetch = 0 : i64, scratch_operands = 0 : i64, tpu.core_type = #tpu.core_type<tc>, window_params = [{transform_indices = @transform_0, window_bounds = array<i64: 2, 1024>}, {transform_indices = @transform_1, window_bounds = array<i64: 1, 1024>}, {transform_indices = @transform_2, window_bounds = array<i64: 2, 1024>}]} {
    %c0 = arith.constant 0 : index
    %c0_0 = arith.constant 0 : index
    %0 = vector.load %arg2[%c0, %c0_0] : memref<2x1024xf32, #tpu.memory_space<vmem>>, vector<2x1024xf32>
    %c0_1 = arith.constant 0 : index
    %c0_2 = arith.constant 0 : index
    %1 = vector.load %arg3[%c0_1, %c0_2] : memref<1x1024xf32, #tpu.memory_space<vmem>>, vector<1x1024xf32>
    %cst = arith.constant 0.000000e+00 : f32
    %2 = vector.broadcast %cst : f32 to vector<2x1024xf32>
    %3 = arith.minimumf %0, %2 : vector<2x1024xf32>
    %4 = vector.broadcast %1 : vector<1x1024xf32> to vector<2x1024xf32>
    %5 = arith.mulf %4, %3 : vector<2x1024xf32>
    %6 = arith.subf %0, %5 : vector<2x1024xf32>
    %c0_3 = arith.constant 0 : index
    %c0_4 = arith.constant 0 : index
    %7 = vector.load %arg4[%c0_3, %c0_4] : memref<2x1024xf32, #tpu.memory_space<vmem>>, vector<2x1024xf32>
    tpu.vector_store %arg4[%c0_3, %c0_4], %6 {strides = array<i32>} : memref<2x1024xf32, #tpu.memory_space<vmem>>, vector<2x1024xf32>,
    return
  }
  func.func @transform_0(%arg0: i32, %arg1: i32) -> (i32, i32) {
    %c0_i32 = arith.constant 0 : i32
    return %arg1, %arg0 : i32, i32
  }
  func.func @transform_1(%arg0: i32, %arg1: i32) -> (i32, i32) {
    %c0_i32 = arith.constant 0 : i32
    %c0_i32_0 = arith.constant 0 : i32
    return %c0_i32, %arg0 : i32, i32
  }
  func.func @transform_2(%arg0: i32, %arg1: i32) -> (i32, i32) {
    %c0_i32 = arith.constant 0 : i32
    return %arg1, %arg0 : i32, i32
  }
}

</mosaic_0001>

<llo_original>
// kernel: tpu_custom_call.1
$region0: #{tpu_custom_call.1}
  #allocation0 [shape = 'u32[]', space=smem, size = 0x4, offset = 0x4, fixed_abs, tag = 'smem constant byte address 0x4 - core index']
  #allocation1 [shape = 'u32[144,128]{1,0:T(1,128)}', space=vmem, size = 0x12000, scoped, tag = 'internal scratch']
  %s0 = inlined_call_operand.hbm [shape: f32[2,1024], index: 0, kind: input, shape index: {}]
  %s1 = inlined_call_operand.hbm [shape: f32[1,1024], index: 1, kind: input, shape index: {}]
  %s2 = inlined_call_operand.hbm [shape: f32[2,1024], index: 2, kind: output, shape index: {}]
  %s3 = sld [smem:[#allocation0]]
  $region26: #{tpu_custom_call.1} parent=0
    _
  %s5 = ssub.s32 1, %s3
  %s6 = scalar_select 0, %s5, %s3
  $region1: #{tpu_custom_call.1} parent=0
    #allocation2 [shape = 'u8[8192]{0}', space=vmem, size = 0x2000, scoped, tag = 'input window, operand 0, single buffered']
    #allocation3 [shape = 's32[1]{0}', space=sflag, size = 0x4, scoped, tag = 'scoped memory for tpu_custom_call.1']
    #allocation4 [shape = 's32[1]{0}', space=sflag, size = 0x4, scoped, tag = 'scoped memory for tpu_custom_call.1']
    #allocation5 [shape = 'u8[4096]{0}', space=vmem, size = 0x1000, scoped, tag = 'input window, operand 1, single buffered']
    #allocation6 [shape = 's32[1]{0}', space=sflag, size = 0x4, scoped, tag = 'scoped memory for tpu_custom_call.1']
    #allocation7 [shape = 'u8[8192]{0}', space=vmem, size = 0x2000, scoped, tag = 'output window, operand 0, single buffered']
    %7 = vsyncpa [#allocation3], 0
    %8 = vsyncpa [#allocation6], 0
    %9 = vsyncpa [#allocation4], 0
    // Predicated region
    $region2: #{tpu_custom_call.1} parent=1 // pred_check
      _
    $region3: #{tpu_custom_call.1} parent=1 // pred_check_branch
      %11 = sbr.rel (0) target = $region5
    $region4: #{tpu_custom_call.1} parent=1 // pred_region
      %s13 = ssub.s32 256, 256
      %14 = vsyncadd [#allocation3], %s13
      %s16 = sshll.u32 [#allocation2], 4
      %s17 = int_to_ptr.vmem [resolvable:$true] %s16
      %19 = dma.hbm_to_vmem [thread:$0]  %s0, 256, %s17, [#allocation3]
    $region5: #{tpu_custom_call.1} parent=1 // pred_fallthru
      _
    // Predicated region
    $region6: #{tpu_custom_call.1} parent=1 // pred_check
      _
    $region7: #{tpu_custom_call.1} parent=1 // pred_check_branch
      %21 = sbr.rel (0) target = $region9
    $region8: #{tpu_custom_call.1} parent=1 // pred_region
      %s23 = ssub.s32 128, 128
      %24 = vsyncadd [#allocation6], %s23
      %s26 = sshll.u32 [#allocation5], 4
      %s27 = int_to_ptr.vmem [resolvable:$true] %s26
      %29 = dma.hbm_to_vmem [thread:$0]  %s1, 128, %s27, [#allocation6]
    $region9: #{tpu_custom_call.1} parent=1 // pred_fallthru
      _
    // Predicated region
    $region10: #{tpu_custom_call.1} parent=1 // pred_check
      _
    $region11: #{tpu_custom_call.1} parent=1 // pred_check_branch
      %31 = sbr.rel (0) target = $region13
    $region12: #{tpu_custom_call.1} parent=1 // pred_region
      %32 = dma.done [#allocation3], 256
    $region13: #{tpu_custom_call.1} parent=1 // pred_fallthru
      _
    // Predicated region
    $region14: #{tpu_custom_call.1} parent=1 // pred_check
      _
    $region15: #{tpu_custom_call.1} parent=1 // pred_check_branch
      %34 = sbr.rel (0) target = $region17
    $region16: #{tpu_custom_call.1} parent=1 // pred_region
      %35 = dma.done [#allocation6], 128
    $region17: #{tpu_custom_call.1} parent=1 // pred_fallthru
      _
    %v36 = vld [vmem:[#allocation2] sm:$0xff]
    %v37 = vld [vmem:[#allocation2 + $0x8] sm:$0xff]
    %v38 = vld [vmem:[#allocation5] sm:$0xff]
    %v39 = vmin.f32 %v36, 0.0
    %v40 = vmin.f32 %v37, 0.0
    %v42 = vlaneseq
    %v43 = vshrl.u32 %v42, 7
    %v44 = vsub.s32 0, %v43
    %v45 = vrot.slane %v38, %v44
    %v46 = vlaneseq
    %v47 = vshrl.u32 %v46, 7
    %v48 = vsub.s32 1, %v47
    %v49 = vrot.slane %v38, %v48
    %v50 = vlaneseq
    %v51 = vshrl.u32 %v50, 7
    %v52 = vsub.s32 2, %v51
    %v53 = vrot.slane %v38, %v52
    %v54 = vlaneseq
    %v55 = vshrl.u32 %v54, 7
    %v56 = vsub.s32 3, %v55
    %v57 = vrot.slane %v38, %v56
    %v58 = vlaneseq
    %v59 = vshrl.u32 %v58, 7
    %v60 = vsub.s32 4, %v59
    %v61 = vrot.slane %v38, %v60
    %v62 = vlaneseq
    %v63 = vshrl.u32 %v62, 7
    %v64 = vsub.s32 5, %v63
    %v65 = vrot.slane %v38, %v64
    %v66 = vlaneseq
    %v67 = vshrl.u32 %v66, 7
    %v68 = vsub.s32 6, %v67
    %v69 = vrot.slane %v38, %v68
    %v70 = vlaneseq
    %v71 = vshrl.u32 %v70, 7
    %v72 = vsub.s32 7, %v71
    %v73 = vrot.slane %v38, %v72
    %v84 = vcombine.high %v39, %v39
    %v86 = vunpack.c.l.s4 1983009808
    %v87 = vunpack.c.0.s8 %v86
    %v88 = vlaneseq
    %v89 = vshrl.u32 %v88, 7
    %v90 = vsub.s32 %v87, %v89
    %v91 = vrot.slane %v39, %v90
    %v93 = vunpack.c.l.s4 1983009808
    %v94 = vunpack.c.0.s8 %v93
    %v95 = vlaneseq
    %v96 = vshrl.u32 %v95, 7
    %v97 = vsub.s32 %v94, %v96
    %v98 = vrot.slane %v84, %v97
    %v99 = vcombine.high %v91, %v91
    %v100 = vcombine.high %v98, %v98
    %v101 = vcombine.high %v40, %v40
    %v103 = vunpack.c.l.s4 1983009808
    %v104 = vunpack.c.0.s8 %v103
    %v105 = vlaneseq
    %v106 = vshrl.u32 %v105, 7
    %v107 = vsub.s32 %v104, %v106
    %v108 = vrot.slane %v40, %v107
    %v110 = vunpack.c.l.s4 1983009808
    %v111 = vunpack.c.0.s8 %v110
    %v112 = vlaneseq
    %v113 = vshrl.u32 %v112, 7
    %v114 = vsub.s32 %v111, %v113
    %v115 = vrot.slane %v101, %v114
    %v116 = vcombine.high %v108, %v108
    %v117 = vcombine.high %v115, %v115
    %v126 = vmul.f32 %v45, %v91
    %v127 = vmul.f32 %v49, %v99
    %v128 = vmul.f32 %v53, %v98
    %v129 = vmul.f32 %v57, %v100
    %v130 = vmul.f32 %v61, %v108
    %v131 = vmul.f32 %v65, %v116
    %v132 = vmul.f32 %v69, %v115
    %v133 = vmul.f32 %v73, %v117
    %v142 = vcombine.low %v126, %v127
    %v143 = vcombine.low %v128, %v129
    %v145 = vunpack.c.l.s4 1983009808
    %v146 = vunpack.c.0.s8 %v145
    %v147 = vlaneseq
    %v148 = vshrl.u32 %v147, 7
    %v149 = vsub.s32 %v146, %v148
    %v150 = vrot.slane %v142, %v149
    %v152 = vunpack.c.l.s4 1983009808
    %v153 = vunpack.c.0.s8 %v152
    %v154 = vlaneseq
    %v155 = vshrl.u32 %v154, 7
    %v156 = vsub.s32 %v153, %v155
    %v157 = vrot.slane %v143, %v156
    %v158 = vcombine.low %v150, %v157
    %v159 = vcombine.low %v130, %v131
    %v160 = vcombine.low %v132, %v133
    %v162 = vunpack.c.l.s4 1983009808
    %v163 = vunpack.c.0.s8 %v162
    %v164 = vlaneseq
    %v165 = vshrl.u32 %v164, 7
    %v166 = vsub.s32 %v163, %v165
    %v167 = vrot.slane %v159, %v166
    %v169 = vunpack.c.l.s4 1983009808
    %v170 = vunpack.c.0.s8 %v169
    %v171 = vlaneseq
    %v172 = vshrl.u32 %v171, 7
    %v173 = vsub.s32 %v170, %v172
    %v174 = vrot.slane %v160, %v173
    %v175 = vcombine.low %v167, %v174
    %v178 = vsub.f32 %v36, %v158
    %v179 = vsub.f32 %v37, %v175
    %180 = vst [vmem:[#allocation7] sm:$0xff] %v178
    %181 = vst [vmem:[#allocation7 + $0x8] sm:$0xff] %v179
    // Predicated region
    $region18: #{tpu_custom_call.1} parent=1 // pred_check
      _
    $region19: #{tpu_custom_call.1} parent=1 // pred_check_branch
      %183 = sbr.rel (0) target = $region21
    $region20: #{tpu_custom_call.1} parent=1 // pred_region
      %s185 = ssub.s32 256, 256
      %186 = vsyncadd [#allocation4], %s185
      %s188 = sshll.u32 [#allocation7], 4
      %s189 = int_to_ptr.vmem [resolvable:$true] %s188
      %191 = dma.vmem_to_hbm [thread:$0]  %s189, 256, %s2, [#allocation4]
    $region21: #{tpu_custom_call.1} parent=1 // pred_fallthru
      _
    // Predicated region
    $region22: #{tpu_custom_call.1} parent=1 // pred_check
      _
    $region23: #{tpu_custom_call.1} parent=1 // pred_check_branch
      %193 = sbr.rel (0) target = $region25
    $region24: #{tpu_custom_call.1} parent=1 // pred_region
      %194 = dma.done [#allocation4], 256
    $region25: #{tpu_custom_call.1} parent=1 // pred_fallthru
      _
    %195 = vsyncpa [#allocation3], 1
    %196 = vsyncpa [#allocation6], 1
    %197 = vsyncpa [#allocation4], 1

</llo_original>
